<compile_context>
chip_gen: v6e
topology: v6e:2x2x1
jax: 0.10.0
libtpu: 0.0.40
codegen_flags: <defaults>
</compile_context>

<pallas_src>
import functools

import jax
import jax.numpy as jnp
from jax.experimental import pallas as pl
from jax.experimental.pallas import tpu as pltpu

_MASK_VALUE = -9e15
_LEAKY_ALPHA = 0.2


def _round_up(v, m):
    return -(-v // m) * m


def _vmem_capacity_bytes():
    """Physical VMEM per core; fall back to the v7x lower bound (64 MiB)."""
    try:
        return int(pltpu.get_tpu_info().vmem_capacity_bytes)
    except Exception:
        return 64 * 1024 * 1024


def _pad_nodes(n):
    """Pad node count so a well-shaped (multiple-of-16) query tile always exists."""
    return _round_up(n, 128) if n >= 128 else _round_up(n, 16)


def _choose_tq(n_pad):
    for t in (512, 256, 128, 64, 32, 16):
        if n_pad % t == 0:
            return t
    return n_pad  # unreachable: n_pad is always a multiple of 16


def _attn_vmem_bytes(tq, n_pad, n_heads, hf):
    """Rough VMEM footprint of the attention phase (lane/sublane padded)."""
    lane = lambda v: _round_up(v, 128)
    return (2 * tq * lane(n_pad) * 2               # bias tiles (bf16, double-buffered)
            + 2 * tq * lane(hf) * 4                # output tiles
            + 2 * tq * lane(n_heads) * 4           # e_src tiles
            + 2 * _round_up(n_pad, 16) * lane(hf) * 2      # Wh resident (bf16)
            + 2 * _round_up(n_heads, 8) * lane(n_pad) * 4  # e_dst resident
            + 6 * tq * lane(n_pad) * 4)            # f32 bias / e / p temporaries


def _gat_project_kernel(x_ref, w_ref, asrc_ref, adst_ref,
                        wh_ref, esrc_ref, edst_ref, *, n_heads, f_out):
    """Per row-tile: Wh = x @ W_cat (all heads fused) + per-node attention logits.

    x_ref    : (TP, Fin)          node-feature tile
    w_ref    : (Fin, H*Fout)      head-concatenated projection weights (resident)
    asrc_ref : (H, Fout)          "source" attention vectors (resident)
    adst_ref : (H, Fout)          "destination" attention vectors (resident)
    wh_ref   : (TP, H*Fout) bf16  projected features (MXU operand of att @ Wh)
    esrc_ref : (TP, H) f32        per-node source logits   Wh_h . a_src_h
    edst_ref : (TP, H) f32        per-node destination logits Wh_h . a_dst_h
    """
    wh = jnp.dot(x_ref[...], w_ref[...], preferred_element_type=jnp.float32)
    wh_ref[...] = wh.astype(wh_ref.dtype)          # bf16 cast happens ONCE per layer
    a_src = asrc_ref[...]
    a_dst = adst_ref[...]
    for h in range(n_heads):                        # H is small and static
        lo, hi = h * f_out, (h + 1) * f_out
        wh_h = wh[:, lo:hi]                         # (TP, Fout) f32
        esrc_ref[:, h:h + 1] = jnp.sum(wh_h * a_src[h:h + 1, :], axis=-1, keepdims=True)
        edst_ref[:, h:h + 1] = jnp.sum(wh_h * a_dst[h:h + 1, :], axis=-1, keepdims=True)


def _gat_attention_kernel(bias_ref, wh_ref, esrc_ref, edst_ref, o_ref,
                          *, n_heads, f_out):
    """GAT attention for one (TQ, N) query-row tile; all heads fused.

    bias_ref : (TQ, N) bf16       additive adjacency bias tile (0 or -9e15)
    wh_ref   : (N, H*Fout) bf16   projected features for ALL nodes (resident)
    esrc_ref : (TQ, H) f32        precomputed source logits of the query rows
    edst_ref : (H, N) f32         precomputed destination logits (lane-dense rows)
    o_ref    : (TQ, H*Fout) f32   head-concatenated output tile
    """
    bias = bias_ref[...].astype(jnp.float32)        # (TQ, N), shared by all heads
    for h in range(n_heads):
        lo, hi = h * f_out, (h + 1) * f_out
        e_src = esrc_ref[:, h:h + 1]                # (TQ, 1)  — hoisted, no reduce here
        e_dst = edst_ref[h:h + 1, :]                # (1, N)   — hoisted, no transpose here
        e = e_src + e_dst                           # (TQ, N)
        e = jnp.maximum(e, _LEAKY_ALPHA * e)        # LeakyReLU (alpha in (0,1))
        e = e + bias                                # adjacency mask
        # numerically-stable softmax, normalization deferred past the matmul
        e = e - jnp.max(e, axis=-1, keepdims=True)
        p = jnp.exp(e)
        r = jnp.sum(p, axis=-1, keepdims=True)      # (TQ, 1)
        h_out = jnp.dot(p.astype(jnp.bfloat16), wh_ref[:, lo:hi],
                        preferred_element_type=jnp.float32)      # (TQ, Fout)
        h_out = h_out * pl.reciprocal(r, approx=True)
        # ELU (clamp so the unselected branch never produces inf)
        h_out = jnp.where(h_out > 0, h_out,
                          jnp.exp(jnp.minimum(h_out, 0.0)) - 1.0)
        o_ref[:, lo:hi] = h_out.astype(o_ref.dtype)


def gat_layer(x, bias, w_cat, a_src, a_dst, *, tq):
    """One multi-head GAT layer; output = concat over heads, shape (N, H*Fout)."""
    n_pad, f_in = x.shape
    n_heads, f_out = a_src.shape
    hf = n_heads * f_out
    assert w_cat.shape == (f_in, hf), w_cat.shape
    assert a_dst.shape == (n_heads, f_out), a_dst.shape
    assert bias.shape == (n_pad, n_pad), bias.shape
    assert n_pad % tq == 0 and tq % 16 == 0, (n_pad, tq)

    budget = int(0.8 * _vmem_capacity_bytes())
    # shrink the query tile if the (TQ, N) working set would overrun VMEM (v7x: 64 MiB)
    while tq > 16 and tq % 32 == 0 and _attn_vmem_bytes(tq, n_pad, n_heads, hf) > budget:
        tq //= 2

    cparams = pltpu.CompilerParams(dimension_semantics=("parallel",),
                                   vmem_limit_bytes=budget)

    # ---- Phase 1: projection (once per layer) -------------------------------
    proj = functools.partial(_gat_project_kernel, n_heads=n_heads, f_out=f_out)
    wh, e_src, e_dst_nh = pl.pallas_call(
        proj,
        out_shape=(jax.ShapeDtypeStruct((n_pad, hf), jnp.bfloat16),
                   jax.ShapeDtypeStruct((n_pad, n_heads), jnp.float32),
                   jax.ShapeDtypeStruct((n_pad, n_heads), jnp.float32)),
        grid_spec=pltpu.PrefetchScalarGridSpec(
            num_scalar_prefetch=0,
            grid=(n_pad // tq,),
            in_specs=[
                pl.BlockSpec((tq, f_in), lambda i: (i, 0)),          # x row tile
                pl.BlockSpec((f_in, hf), lambda i: (0, 0)),          # W_cat (resident)
                pl.BlockSpec((n_heads, f_out), lambda i: (0, 0)),    # a_src
                pl.BlockSpec((n_heads, f_out), lambda i: (0, 0)),    # a_dst
            ],
            out_specs=[pl.BlockSpec((tq, hf), lambda i: (i, 0)),     # Wh (bf16)
                       pl.BlockSpec((tq, n_heads), lambda i: (i, 0)),
                       pl.BlockSpec((tq, n_heads), lambda i: (i, 0))],
        ),
        compiler_params=cparams,
    )(x, w_cat, a_src, a_dst)

    # (N, H) -> (H, N): one tiny XLA transpose per layer so the attention kernel
    # reads a lane-dense row instead of doing a per-head per-tile XLU transpose.
    e_dst = jnp.transpose(e_dst_nh)

    # ---- Phase 2: attention over query-row tiles (q axis fully parallel) ----
    attn = functools.partial(_gat_attention_kernel, n_heads=n_heads, f_out=f_out)
    return pl.pallas_call(
        attn,
        out_shape=jax.ShapeDtypeStruct((n_pad, hf), jnp.float32),
        grid_spec=pltpu.PrefetchScalarGridSpec(
            num_scalar_prefetch=0,
            grid=(n_pad // tq,),
            in_specs=[
                pl.BlockSpec((tq, n_pad), lambda q: (q, 0)),         # bias tile (streamed)
                pl.BlockSpec((n_pad, hf), lambda q: (0, 0)),         # Wh bf16 (resident)
                pl.BlockSpec((tq, n_heads), lambda q: (q, 0)),       # e_src row tile
                pl.BlockSpec((n_heads, n_pad), lambda q: (0, 0)),    # e_dst (resident)
            ],
            out_specs=pl.BlockSpec((tq, hf), lambda q: (q, 0)),      # lane-dense out
        ),
        compiler_params=cparams,
    )(bias, wh, e_src, e_dst)


def multi_heads_attention_forward(x, adj, params, *, tq=None):
    """MultiHeadsAttentionLayer.forward (dropout p=0 -> identity, mask_base=None)."""
    n = x.shape[0]
    n_pad = _pad_nodes(n)
    if n_pad != n:
        # padded nodes have zero adjacency -> fully masked, never attended to
        x = jnp.pad(x, ((0, n_pad - n), (0, 0)))
        adj = jnp.pad(adj, ((0, n_pad - n), (0, n_pad - n)))

    if tq is None:
        tq = _choose_tq(n_pad)
    assert n_pad % tq == 0 and tq % 16 == 0, (n, n_pad, tq)

    # Additive adjacency bias, computed ONCE and shared by both layers.  bf16
    # halves the dominant (N, N) HBM stream; -9e15 survives the bf16 round-trip.
    # TODO(synk): on v5e store adj as int8/bit-packed and expand in-kernel.
    bias = jnp.where(adj > 0, 0.0, _MASK_VALUE).astype(jnp.bfloat16)

    # First-level heads, concatenated along features -> (N, H*Fh)
    x_multi = gat_layer(x, bias, params["w1_cat"],
                        params["a1_src"], params["a1_dst"], tq=tq)
    # Final single-head attention layer (same kernels, H = 1)
    out = gat_layer(x_multi, bias, params["w2_cat"],
                    params["a2_src"], params["a2_dst"], tq=tq)
    return out[:n]


def init_params(key, dim_input, dim_hidden, dim_output, n_heads):
    k1, k2, k3, k4 = jax.random.split(key, 4)

    def xavier(k, shape, fan_in, fan_out):
        limit = jnp.sqrt(6.0 / (fan_in + fan_out))
        return jax.random.uniform(k, shape, jnp.float32, -limit, limit)

    # first-level heads
    w1 = xavier(k1, (n_heads, dim_input, dim_hidden), dim_input, dim_hidden)
    a1 = xavier(k2, (n_heads, 2 * dim_hidden), 2 * dim_hidden, 1)
    # final single head over the concatenated features
    w2 = xavier(k3, (1, n_heads * dim_hidden, dim_output),
                n_heads * dim_hidden, dim_output)
    a2 = xavier(k4, (1, 2 * dim_output), 2 * dim_output, 1)

    return {
        # head-concatenated projection: column block h corresponds to head h
        "w1_cat": jnp.transpose(w1, (1, 0, 2)).reshape(dim_input,
                                                       n_heads * dim_hidden),
        "a1_src": a1[:, :dim_hidden],          # (H, Fh)
        "a1_dst": a1[:, dim_hidden:],          # (H, Fh)
        "w2_cat": w2[0],                       # (H*Fh, Fout)
        "a2_src": a2[:, :dim_output],          # (1, Fout)
        "a2_dst": a2[:, dim_output:],          # (1, Fout)
    }


if __name__ == "__main__":
    N = 30            # not a multiple of 16 -> exercises the node-padding path
    DIM_IN = 8
    DIM_HID = 8
    DIM_OUT = 4
    N_HEADS = 4
    TQ = 16           # query-row tile -> 2 grid steps per layer on the padded graph

    key = jax.random.PRNGKey(0)
    kx, kadj, kp = jax.random.split(key, 3)

    x = jax.random.normal(kx, (N, DIM_IN), jnp.float32)
    # random 0/1 adjacency with self loops
    adj = (jax.random.uniform(kadj, (N, N)) > 0.5).astype(jnp.float32)
    adj = jnp.maximum(adj, jnp.eye(N, dtype=jnp.float32))

    params = init_params(kp, DIM_IN, DIM_HID, DIM_OUT, N_HEADS)

    out = multi_heads_attention_forward(x, adj, params, tq=TQ)
    jax.block_until_ready(out)
    assert out.shape == (N, DIM_OUT), out.shape
    assert bool(jnp.all(jnp.isfinite(out)))
    print("KERNEL_OK")
</pallas_src>

<mosaic_0001>
module attributes {stable_mosaic.version = 11 : i64} {
  func.func @_gat_project_kernel(%arg0: i32, %arg1: memref<16x8xf32, #tpu.memory_space<vmem>>, %arg2: memref<8x32xf32, #tpu.memory_space<vmem>>, %arg3: memref<4x8xf32, #tpu.memory_space<vmem>>, %arg4: memref<4x8xf32, #tpu.memory_space<vmem>>, %arg5: memref<16x32xbf16, #tpu.memory_space<vmem>>, %arg6: memref<16x4xf32, #tpu.memory_space<vmem>>, %arg7: memref<16x4xf32, #tpu.memory_space<vmem>>) attributes {dimension_semantics = [#tpu.dimension_semantics<parallel>], iteration_bounds = array<i64: 2>, scalar_prefetch = 0 : i64, scratch_operands = 0 : i64, tpu.core_type = #tpu.core_type<tc>, window_params = [{transform_indices = @transform_0, window_bounds = array<i64: 16, 8>}, {pipeline_mode = #tpu.pipeline_mode<synchronous>, transform_indices = @transform_1, window_bounds = array<i64: 8, 32>}, {pipeline_mode = #tpu.pipeline_mode<synchronous>, transform_indices = @transform_2, window_bounds = array<i64: 4, 8>}, {pipeline_mode = #tpu.pipeline_mode<synchronous>, transform_indices = @transform_3, window_bounds = array<i64: 4, 8>}, {transform_indices = @transform_4, window_bounds = array<i64: 16, 32>}, {transform_indices = @transform_5, window_bounds = array<i64: 16, 4>}, {transform_indices = @transform_6, window_bounds = array<i64: 16, 4>}]} {
    %c0 = arith.constant 0 : index
    %c0_0 = arith.constant 0 : index
    %0 = vector.load %arg1[%c0, %c0_0] : memref<16x8xf32, #tpu.memory_space<vmem>>, vector<16x8xf32>
    %c0_1 = arith.constant 0 : index
    %c0_2 = arith.constant 0 : index
    %1 = vector.load %arg2[%c0_1, %c0_2] : memref<8x32xf32, #tpu.memory_space<vmem>>, vector<8x32xf32>
    %cst = arith.constant dense<0.000000e+00> : vector<16x32xf32>
    %2 = tpu.matmul %0, %1, %cst {dimension_numbers = #tpu.dot_dimension_numbers<[1], [0], [0], [1], [0, 0, 1, 1], [], []>} : vector<16x8xf32>, vector<8x32xf32>, vector<16x32xf32> -> vector<16x32xf32>
    %3 = arith.truncf %2 : vector<16x32xf32> to vector<16x32xbf16>
    %c0_3 = arith.constant 0 : index
    %c0_4 = arith.constant 0 : index
    %4 = vector.load %arg5[%c0_3, %c0_4] : memref<16x32xbf16, #tpu.memory_space<vmem>>, vector<16x32xbf16>
    tpu.vector_store %arg5[%c0_3, %c0_4], %3 {strides = array<i32>} : memref<16x32xbf16, #tpu.memory_space<vmem>>, vector<16x32xbf16>,
    %c0_5 = arith.constant 0 : index
    %c0_6 = arith.constant 0 : index
    %5 = vector.load %arg3[%c0_5, %c0_6] : memref<4x8xf32, #tpu.memory_space<vmem>>, vector<4x8xf32>
    %c0_7 = arith.constant 0 : index
    %c0_8 = arith.constant 0 : index
    %6 = vector.load %arg4[%c0_7, %c0_8] : memref<4x8xf32, #tpu.memory_space<vmem>>, vector<4x8xf32>
    %7 = vector.extract_strided_slice %2 {offsets = [0, 0], sizes = [16, 8], strides = [1, 1]} : vector<16x32xf32> to vector<16x8xf32>
    %8 = vector.extract_strided_slice %5 {offsets = [0, 0], sizes = [1, 8], strides = [1, 1]} : vector<4x8xf32> to vector<1x8xf32>
    %9 = vector.broadcast %8 : vector<1x8xf32> to vector<16x8xf32>
    %10 = arith.mulf %7, %9 : vector<16x8xf32>
    %cst_9 = arith.constant dense<0.000000e+00> : vector<16xf32>
    %11 = vector.multi_reduction <add>, %10, %cst_9 [1] : vector<16x8xf32> to vector<16xf32>
    %12 = vector.shape_cast %11 : vector<16xf32> to vector<16x1xf32>
    %c0_10 = arith.constant 0 : index
    %c0_11 = arith.constant 0 : index
    %13 = vector.load %arg6[%c0_10, %c0_11] : memref<16x4xf32, #tpu.memory_space<vmem>>, vector<16x1xf32>
    tpu.vector_store %arg6[%c0_10, %c0_11], %12 {strides = array<i32>} : memref<16x4xf32, #tpu.memory_space<vmem>>, vector<16x1xf32>,
    %14 = vector.extract_strided_slice %6 {offsets = [0, 0], sizes = [1, 8], strides = [1, 1]} : vector<4x8xf32> to vector<1x8xf32>
    %15 = vector.broadcast %14 : vector<1x8xf32> to vector<16x8xf32>
    %16 = arith.mulf %7, %15 : vector<16x8xf32>
    %cst_12 = arith.constant dense<0.000000e+00> : vector<16xf32>
    %17 = vector.multi_reduction <add>, %16, %cst_12 [1] : vector<16x8xf32> to vector<16xf32>
    %18 = vector.shape_cast %17 : vector<16xf32> to vector<16x1xf32>
    %c0_13 = arith.constant 0 : index
    %c0_14 = arith.constant 0 : index
    %19 = vector.load %arg7[%c0_13, %c0_14] : memref<16x4xf32, #tpu.memory_space<vmem>>, vector<16x1xf32>
    tpu.vector_store %arg7[%c0_13, %c0_14], %18 {strides = array<i32>} : memref<16x4xf32, #tpu.memory_space<vmem>>, vector<16x1xf32>,
    %20 = vector.extract_strided_slice %2 {offsets = [0, 8], sizes = [16, 8], strides = [1, 1]} : vector<16x32xf32> to vector<16x8xf32>
    %21 = vector.extract_strided_slice %5 {offsets = [1, 0], sizes = [1, 8], strides = [1, 1]} : vector<4x8xf32> to vector<1x8xf32>
    %22 = vector.broadcast %21 : vector<1x8xf32> to vector<16x8xf32>
    %23 = arith.mulf %20, %22 : vector<16x8xf32>
    %cst_15 = arith.constant dense<0.000000e+00> : vector<16xf32>
    %24 = vector.multi_reduction <add>, %23, %cst_15 [1] : vector<16x8xf32> to vector<16xf32>
    %25 = vector.shape_cast %24 : vector<16xf32> to vector<16x1xf32>
    %c0_16 = arith.constant 0 : index
    %c1 = arith.constant 1 : index
    %26 = vector.load %arg6[%c0_16, %c1] : memref<16x4xf32, #tpu.memory_space<vmem>>, vector<16x1xf32>
    tpu.vector_store %arg6[%c0_16, %c1], %25 {strides = array<i32>} : memref<16x4xf32, #tpu.memory_space<vmem>>, vector<16x1xf32>,
    %27 = vector.extract_strided_slice %6 {offsets = [1, 0], sizes = [1, 8], strides = [1, 1]} : vector<4x8xf32> to vector<1x8xf32>
    %28 = vector.broadcast %27 : vector<1x8xf32> to vector<16x8xf32>
    %29 = arith.mulf %20, %28 : vector<16x8xf32>
    %cst_17 = arith.constant dense<0.000000e+00> : vector<16xf32>
    %30 = vector.multi_reduction <add>, %29, %cst_17 [1] : vector<16x8xf32> to vector<16xf32>
    %31 = vector.shape_cast %30 : vector<16xf32> to vector<16x1xf32>
    %c0_18 = arith.constant 0 : index
    %c1_19 = arith.constant 1 : index
    %32 = vector.load %arg7[%c0_18, %c1_19] : memref<16x4xf32, #tpu.memory_space<vmem>>, vector<16x1xf32>
    tpu.vector_store %arg7[%c0_18, %c1_19], %31 {strides = array<i32>} : memref<16x4xf32, #tpu.memory_space<vmem>>, vector<16x1xf32>,
    %33 = vector.extract_strided_slice %2 {offsets = [0, 16], sizes = [16, 8], strides = [1, 1]} : vector<16x32xf32> to vector<16x8xf32>
    %34 = vector.extract_strided_slice %5 {offsets = [2, 0], sizes = [1, 8], strides = [1, 1]} : vector<4x8xf32> to vector<1x8xf32>
    %35 = vector.broadcast %34 : vector<1x8xf32> to vector<16x8xf32>
    %36 = arith.mulf %33, %35 : vector<16x8xf32>
    %cst_20 = arith.constant dense<0.000000e+00> : vector<16xf32>
    %37 = vector.multi_reduction <add>, %36, %cst_20 [1] : vector<16x8xf32> to vector<16xf32>
    %38 = vector.shape_cast %37 : vector<16xf32> to vector<16x1xf32>
    %c0_21 = arith.constant 0 : index
    %c2 = arith.constant 2 : index
    %39 = vector.load %arg6[%c0_21, %c2] : memref<16x4xf32, #tpu.memory_space<vmem>>, vector<16x1xf32>
    tpu.vector_store %arg6[%c0_21, %c2], %38 {strides = array<i32>} : memref<16x4xf32, #tpu.memory_space<vmem>>, vector<16x1xf32>,
    %40 = vector.extract_strided_slice %6 {offsets = [2, 0], sizes = [1, 8], strides = [1, 1]} : vector<4x8xf32> to vector<1x8xf32>
    %41 = vector.broadcast %40 : vector<1x8xf32> to vector<16x8xf32>
    %42 = arith.mulf %33, %41 : vector<16x8xf32>
    %cst_22 = arith.constant dense<0.000000e+00> : vector<16xf32>
    %43 = vector.multi_reduction <add>, %42, %cst_22 [1] : vector<16x8xf32> to vector<16xf32>
    %44 = vector.shape_cast %43 : vector<16xf32> to vector<16x1xf32>
    %c0_23 = arith.constant 0 : index
    %c2_24 = arith.constant 2 : index
    %45 = vector.load %arg7[%c0_23, %c2_24] : memref<16x4xf32, #tpu.memory_space<vmem>>, vector<16x1xf32>
    tpu.vector_store %arg7[%c0_23, %c2_24], %44 {strides = array<i32>} : memref<16x4xf32, #tpu.memory_space<vmem>>, vector<16x1xf32>,
    %46 = vector.extract_strided_slice %2 {offsets = [0, 24], sizes = [16, 8], strides = [1, 1]} : vector<16x32xf32> to vector<16x8xf32>
    %47 = vector.extract_strided_slice %5 {offsets = [3, 0], sizes = [1, 8], strides = [1, 1]} : vector<4x8xf32> to vector<1x8xf32>
    %48 = vector.broadcast %47 : vector<1x8xf32> to vector<16x8xf32>
    %49 = arith.mulf %46, %48 : vector<16x8xf32>
    %cst_25 = arith.constant dense<0.000000e+00> : vector<16xf32>
    %50 = vector.multi_reduction <add>, %49, %cst_25 [1] : vector<16x8xf32> to vector<16xf32>
    %51 = vector.shape_cast %50 : vector<16xf32> to vector<16x1xf32>
    %c0_26 = arith.constant 0 : index
    %c3 = arith.constant 3 : index
    %52 = vector.load %arg6[%c0_26, %c3] : memref<16x4xf32, #tpu.memory_space<vmem>>, vector<16x1xf32>
    tpu.vector_store %arg6[%c0_26, %c3], %51 {strides = array<i32>} : memref<16x4xf32, #tpu.memory_space<vmem>>, vector<16x1xf32>,
    %53 = vector.extract_strided_slice %6 {offsets = [3, 0], sizes = [1, 8], strides = [1, 1]} : vector<4x8xf32> to vector<1x8xf32>
    %54 = vector.broadcast %53 : vector<1x8xf32> to vector<16x8xf32>
    %55 = arith.mulf %46, %54 : vector<16x8xf32>
    %cst_27 = arith.constant dense<0.000000e+00> : vector<16xf32>
    %56 = vector.multi_reduction <add>, %55, %cst_27 [1] : vector<16x8xf32> to vector<16xf32>
    %57 = vector.shape_cast %56 : vector<16xf32> to vector<16x1xf32>
    %c0_28 = arith.constant 0 : index
    %c3_29 = arith.constant 3 : index
    %58 = vector.load %arg7[%c0_28, %c3_29] : memref<16x4xf32, #tpu.memory_space<vmem>>, vector<16x1xf32>
    tpu.vector_store %arg7[%c0_28, %c3_29], %57 {strides = array<i32>} : memref<16x4xf32, #tpu.memory_space<vmem>>, vector<16x1xf32>,
    return
  }
  func.func @transform_0(%arg0: i32) -> (i32, i32) {
    %c0_i32 = arith.constant 0 : i32
    %c0_i32_0 = arith.constant 0 : i32
    return %arg0, %c0_i32 : i32, i32
  }
  func.func @transform_1(%arg0: i32) -> (i32, i32) {
    %c0_i32 = arith.constant 0 : i32
    %c0_i32_0 = arith.constant 0 : i32
    %c0_i32_1 = arith.constant 0 : i32
    return %c0_i32, %c0_i32_0 : i32, i32
  }
  func.func @transform_2(%arg0: i32) -> (i32, i32) {
    %c0_i32 = arith.constant 0 : i32
    %c0_i32_0 = arith.constant 0 : i32
    %c0_i32_1 = arith.constant 0 : i32
    return %c0_i32, %c0_i32_0 : i32, i32
  }
  func.func @transform_3(%arg0: i32) -> (i32, i32) {
    %c0_i32 = arith.constant 0 : i32
    %c0_i32_0 = arith.constant 0 : i32
    %c0_i32_1 = arith.constant 0 : i32
    return %c0_i32, %c0_i32_0 : i32, i32
  }
  func.func @transform_4(%arg0: i32) -> (i32, i32) {
    %c0_i32 = arith.constant 0 : i32
    %c0_i32_0 = arith.constant 0 : i32
    return %arg0, %c0_i32 : i32, i32
  }
  func.func @transform_5(%arg0: i32) -> (i32, i32) {
    %c0_i32 = arith.constant 0 : i32
    %c0_i32_0 = arith.constant 0 : i32
    return %arg0, %c0_i32 : i32, i32
  }
  func.func @transform_6(%arg0: i32) -> (i32, i32) {
    %c0_i32 = arith.constant 0 : i32
    %c0_i32_0 = arith.constant 0 : i32
    return %arg0, %c0_i32 : i32, i32
  }
}

</mosaic_0001>

<llo_original>
// kernel: tpu_custom_call.1
$region0: #{tpu_custom_call.1}
  #allocation0 [shape = 'u32[]', space=smem, size = 0x4, offset = 0x4, fixed_abs, tag = 'smem constant byte address 0x4 - core index']
  #allocation1 [shape = 'u32[144,128]{1,0:T(1,128)}', space=vmem, size = 0x12000, scoped, tag = 'internal scratch']
  %s0 = inlined_call_operand.vmem [shape: f32[32,8], index: 0, kind: input, shape index: {}]
  %s1 = inlined_call_operand.vmem [shape: f32[8,32], index: 1, kind: input, shape index: {}]
  %s2 = inlined_call_operand.vmem [shape: f32[4,8], index: 2, kind: input, shape index: {}]
  %s3 = inlined_call_operand.vmem [shape: f32[4,8], index: 3, kind: input, shape index: {}]
  %s4 = inlined_call_operand.hbm [shape: bf16[32,32], index: 4, kind: output, shape index: {0}]
  %s5 = inlined_call_operand.vmem [shape: f32[32,4], index: 5, kind: output, shape index: {1}]
  %s6 = inlined_call_operand.vmem [shape: f32[32,4], index: 6, kind: output, shape index: {2}]
  %7 = xla_tuple %s4, %s5, %s6
  %s8 = sld [smem:[#allocation0]]
  $region65: #{tpu_custom_call.1} parent=0
    _
  %s10 = ssub.s32 1, %s8
  %s11 = scalar_select 0, %s10, %s8
  $region1: #{tpu_custom_call.1} parent=0
    #allocation2 [shape = 'u8[8192]{0}', space=vmem, size = 0x2000, scoped, tag = 'output window, operand 0']
    #allocation3 [shape = 's32[2]{0}', space=sflag, size = 0x8, scoped, tag = 'scoped memory for tpu_custom_call.1']
    %12 = vsyncpa [#allocation3], 0
    %s13 = scalar_lea.sflag [#allocation3], 1
    %14 = vsyncpa %s13, 0
    loop: start=0, step=1, limit=4
    $region2: #{tpu_custom_call.1} parent=1 // loop_pre_header
      _
    $region3: #{tpu_custom_call.1} parent=1 // loop_header
      %s16 = sphi 0, %s20
      %p17 = scmp.ge.s32.totalorder %s16, 4
      %s26 = sphi 0, %s28
      %s29 = sphi 0, %s26
      %s30 = sphi 0, %s29
      %s46 = sphi 0, %s30
      %s50 = sphi 0, %s50
      %s52 = sphi 0, %s50
      %s53 = sphi 0, %s52
      %s67 = sphi 0, %s53
      %s71 = sphi 0, %s71
      %s73 = sphi 0, %s71
      %s74 = sphi 0, %s73
      %s88 = sphi 0, %s74
      %s92 = sphi 0, %s92
      %s94 = sphi 0, %s92
      %s95 = sphi 0, %s94
      %s109 = sphi 0, %s95
      %s115 = sphi 0, %s117
      %s118 = sphi 0, %s115
      %s119 = sphi 0, %s118
      %s135 = sphi 0, %s119
      %s141 = sphi 0, %s143
      %s144 = sphi 0, %s141
      %s145 = sphi 0, %s144
      %s161 = sphi 0, %s145
      %s167 = sphi 0, %s169
      %s170 = sphi 0, %s167
      %s171 = sphi 0, %s170
      %s187 = sphi 0, %s171
    $region4: #{tpu_custom_call.1} parent=1 // loop_header_branch
      %19 = sbr.rel (%p17) target = $region8
    $region5: #{tpu_custom_call.1} parent=1 // loop_body
      %s21 = ssub.s32 %s16, 1
      %s22 = ssub.s32 %s16, 2
      %s23 = sadd.s32 %s16, 1
      %s24 = ssub.s32 %s16, %s23
      %p25 = scmp.eq.s32.totalorder %s24, 0
      %s27 = sadd.s32 %s26, 1
      %s28 = scalar_select %p25, %s26, %s27
      %p31 = pneg %p25
      %p32 = scmp.eq.s32.totalorder %s16, 1
      %p33 = por %p31, %p32
      %p34 = scmp.ne.s32.totalorder %s26, %s29
      %p35 = scmp.eq.s32.totalorder %s16, 0
      %p36 = por %p34, %p35
      %p37 = scmp.ne.s32.totalorder %s26, %s29
      %p38 = scmp.eq.s32.totalorder %s21, 1
      %p39 = por %p37, %p38
      %p40 = scmp.ne.s32.totalorder %s29, %s30
      %p41 = scmp.eq.s32.totalorder %s21, 0
      %p42 = por %p40, %p41
      %p43 = scmp.ne.s32.totalorder %s29, %s30
      %p44 = scmp.eq.s32.totalorder %s22, 1
      %p45 = por %p43, %p44
      %p47 = scmp.ne.s32.totalorder %s30, %s46
      %p48 = scmp.eq.s32.totalorder %s22, 0
      %p49 = por %p47, %p48
      %s51 = sadd.s32 %s50, 1
      %p54 = scmp.eq.s32.totalorder %s16, 1
      %p55 = scmp.ne.s32.totalorder %s50, %s52
      %p56 = scmp.eq.s32.totalorder %s16, 0
      %p57 = por %p55, %p56
      %p58 = scmp.ne.s32.totalorder %s50, %s52
      %p59 = scmp.eq.s32.totalorder %s21, 1
      %p60 = por %p58, %p59
      %p61 = scmp.ne.s32.totalorder %s52, %s53
      %p62 = scmp.eq.s32.totalorder %s21, 0
      %p63 = por %p61, %p62
      %p64 = scmp.ne.s32.totalorder %s52, %s53
      %p65 = scmp.eq.s32.totalorder %s22, 1
      %p66 = por %p64, %p65
      %p68 = scmp.ne.s32.totalorder %s53, %s67
      %p69 = scmp.eq.s32.totalorder %s22, 0
      %p70 = por %p68, %p69
      %s72 = sadd.s32 %s71, 1
      %p75 = scmp.eq.s32.totalorder %s16, 1
      %p76 = scmp.ne.s32.totalorder %s71, %s73
      %p77 = scmp.eq.s32.totalorder %s16, 0
      %p78 = por %p76, %p77
      %p79 = scmp.ne.s32.totalorder %s71, %s73
      %p80 = scmp.eq.s32.totalorder %s21, 1
      %p81 = por %p79, %p80
      %p82 = scmp.ne.s32.totalorder %s73, %s74
      %p83 = scmp.eq.s32.totalorder %s21, 0
      %p84 = por %p82, %p83
      %p85 = scmp.ne.s32.totalorder %s73, %s74
      %p86 = scmp.eq.s32.totalorder %s22, 1
      %p87 = por %p85, %p86
      %p89 = scmp.ne.s32.totalorder %s74, %s88
      %p90 = scmp.eq.s32.totalorder %s22, 0
      %p91 = por %p89, %p90
      %s93 = sadd.s32 %s92, 1
      %p96 = scmp.eq.s32.totalorder %s16, 1
      %p97 = scmp.ne.s32.totalorder %s92, %s94
      %p98 = scmp.eq.s32.totalorder %s16, 0
      %p99 = por %p97, %p98
      %p100 = scmp.ne.s32.totalorder %s92, %s94
      %p101 = scmp.eq.s32.totalorder %s21, 1
      %p102 = por %p100, %p101
      %p103 = scmp.ne.s32.totalorder %s94, %s95
      %p104 = scmp.eq.s32.totalorder %s21, 0
      %p105 = por %p103, %p104
      %p106 = scmp.ne.s32.totalorder %s94, %s95
      %p107 = scmp.eq.s32.totalorder %s22, 1
      %p108 = por %p106, %p107
      %p110 = scmp.ne.s32.totalorder %s95, %s109
      %p111 = scmp.eq.s32.totalorder %s22, 0
      %p112 = por %p110, %p111
      %s113 = ssub.s32 %s16, %s23
      %p114 = scmp.eq.s32.totalorder %s113, 0
      %s116 = sadd.s32 %s115, 1
      %s117 = scalar_select %p114, %s115, %s116
      %p120 = pneg %p114
      %p121 = scmp.eq.s32.totalorder %s16, 1
      %p122 = por %p120, %p121
      %p123 = scmp.ne.s32.totalorder %s115, %s118
      %p124 = scmp.eq.s32.totalorder %s16, 0
      %p125 = por %p123, %p124
      %p126 = scmp.ne.s32.totalorder %s115, %s118
      %p127 = scmp.eq.s32.totalorder %s21, 1
      %p128 = por %p126, %p127
      %p129 = scmp.ne.s32.totalorder %s118, %s119
      %p130 = scmp.eq.s32.totalorder %s21, 0
      %p131 = por %p129, %p130
      %p132 = scmp.ne.s32.totalorder %s118, %s119
      %p133 = scmp.eq.s32.totalorder %s22, 1
      %p134 = por %p132, %p133
      %p136 = scmp.ne.s32.totalorder %s119, %s135
      %p137 = scmp.eq.s32.totalorder %s22, 0
      %p138 = por %p136, %p137
      %s139 = ssub.s32 %s16, %s23
      %p140 = scmp.eq.s32.totalorder %s139, 0
      %s142 = sadd.s32 %s141, 1
      %s143 = scalar_select %p140, %s141, %s142
      %p146 = pneg %p140
      %p147 = scmp.eq.s32.totalorder %s16, 1
      %p148 = por %p146, %p147
      %p149 = scmp.ne.s32.totalorder %s141, %s144
      %p150 = scmp.eq.s32.totalorder %s16, 0
      %p151 = por %p149, %p150
      %p152 = scmp.ne.s32.totalorder %s141, %s144
      %p153 = scmp.eq.s32.totalorder %s21, 1
      %p154 = por %p152, %p153
      %p155 = scmp.ne.s32.totalorder %s144, %s145
      %p156 = scmp.eq.s32.totalorder %s21, 0
      %p157 = por %p155, %p156
      %p158 = scmp.ne.s32.totalorder %s144, %s145
      %p159 = scmp.eq.s32.totalorder %s22, 1
      %p160 = por %p158, %p159
      %p162 = scmp.ne.s32.totalorder %s145, %s161
      %p163 = scmp.eq.s32.totalorder %s22, 0
      %p164 = por %p162, %p163
      %s165 = ssub.s32 %s16, %s23
      %p166 = scmp.eq.s32.totalorder %s165, 0
      %s168 = sadd.s32 %s167, 1
      %s169 = scalar_select %p166, %s167, %s168
      %p172 = pneg %p166
      %p173 = scmp.eq.s32.totalorder %s16, 1
      %p174 = por %p172, %p173
      %p175 = scmp.ne.s32.totalorder %s167, %s170
      %p176 = scmp.eq.s32.totalorder %s16, 0
      %p177 = por %p175, %p176
      %p178 = scmp.ne.s32.totalorder %s167, %s170
      %p179 = scmp.eq.s32.totalorder %s21, 1
      %p180 = por %p178, %p179
      %p181 = scmp.ne.s32.totalorder %s170, %s171
      %p182 = scmp.eq.s32.totalorder %s21, 0
      %p183 = por %p181, %p182
      %p184 = scmp.ne.s32.totalorder %s170, %s171
      %p185 = scmp.eq.s32.totalorder %s22, 1
      %p186 = por %p184, %p185
      %p188 = scmp.ne.s32.totalorder %s171, %s187
      %p189 = scmp.eq.s32.totalorder %s22, 0
      %p190 = por %p188, %p189
      %p191 = scmp.le.s32.totalorder 1, %s16
      %p192 = scmp.lt.s32.totalorder %s16, 3
      %p193 = pnand %p191, %p192
      %p194 = pneg %p193
      // Predicated region
      $region9: #{tpu_custom_call.1} parent=5 // pred_check
        _
      $region10: #{tpu_custom_call.1} parent=5 // pred_check_branch
        %196 = sbr.rel (%p193) target = $region12
      $region11: #{tpu_custom_call.1} parent=5 // pred_region
        %s197 = ssub.s32 %s16, 1
        // Predicated region
        $region13: #{tpu_custom_call.1} parent=11 // pred_check
          %p198 = pneg %p63
        $region14: #{tpu_custom_call.1} parent=11 // pred_check_branch
          %200 = sbr.rel (%p198) target = $region16
        $region15: #{tpu_custom_call.1} parent=11 // pred_region
          _
        $region16: #{tpu_custom_call.1} parent=11 // pred_fallthru
          _
        // Predicated region
        $region17: #{tpu_custom_call.1} parent=11 // pred_check
          %p201 = pneg %p84
        $region18: #{tpu_custom_call.1} parent=11 // pred_check_branch
          %203 = sbr.rel (%p201) target = $region20
        $region19: #{tpu_custom_call.1} parent=11 // pred_region
          _
        $region20: #{tpu_custom_call.1} parent=11 // pred_fallthru
          _
        // Predicated region
        $region21: #{tpu_custom_call.1} parent=11 // pred_check
          %p204 = pneg %p105
        $region22: #{tpu_custom_call.1} parent=11 // pred_check_branch
          %206 = sbr.rel (%p204) target = $region24
        $region23: #{tpu_custom_call.1} parent=11 // pred_region
          _
        $region24: #{tpu_custom_call.1} parent=11 // pred_fallthru
          _
      $region12: #{tpu_custom_call.1} parent=5 // pred_fallthru
        _
      %p207 = scmp.lt.s32.totalorder %s16, 2
      // Predicated region
      $region25: #{tpu_custom_call.1} parent=5 // pred_check
        %p208 = pneg %p207
      $region26: #{tpu_custom_call.1} parent=5 // pred_check_branch
        %210 = sbr.rel (%p208) target = $region28
      $region27: #{tpu_custom_call.1} parent=5 // pred_region
        // Predicated region
        $region29: #{tpu_custom_call.1} parent=27 // pred_check
          %p211 = pneg %p36
        $region30: #{tpu_custom_call.1} parent=27 // pred_check_branch
          %213 = sbr.rel (%p211) target = $region32
        $region31: #{tpu_custom_call.1} parent=27 // pred_region
          %s214 = smul.u32 2, %s16
          %p215 = scmp.lt.s32.totalorder %s214, 3
          %s216 = scalar_select %p215, %s214, 3
          %s217 = smul.addr %s216, 8
          %s218 = scalar_lea.vmem %s0, %s217
          %s219 = smul.u32 2, %s16
        $region32: #{tpu_custom_call.1} parent=27 // pred_fallthru
          _
      $region28: #{tpu_custom_call.1} parent=5 // pred_fallthru
        _
      %p220 = scmp.le.s32.totalorder 1, %s16
      %p221 = scmp.lt.s32.totalorder %s16, 3
      %p222 = pnand %p220, %p221
      %p223 = pneg %p222
      // Predicated region
      $region33: #{tpu_custom_call.1} parent=5 // pred_check
        _
      $region34: #{tpu_custom_call.1} parent=5 // pred_check_branch
        %225 = sbr.rel (%p222) target = $region36
      $region35: #{tpu_custom_call.1} parent=5 // pred_region
        %s226 = ssub.s32 %s16, 1
        %s227 = smul.u32 2, %s21
        %p228 = scmp.lt.s32.totalorder %s227, 3
        %s229 = scalar_select %p228, %s227, 3
        %s230 = smul.addr %s229, 8
        %s231 = scalar_lea.vmem %s0, %s230
        %p232 = pneg %p42
        %p233 = pneg %p39
        %p234 = pneg %p63
        %p235 = pneg %p60
        %p236 = pneg %p84
        %p237 = pneg %p81
        %p238 = pneg %p105
        %p239 = pneg %p102
        %p240 = pneg %p131
        %p241 = pneg %p128
        %s242 = sand.u32 %s118, 1
        %s243 = scalar_lea.sflag [#allocation3], %s242
        %s244 = sand.u32 %s118, 1
        %s245 = smul.addr %s244, 8
        %s246 = scalar_lea.vmem [#allocation2], %s245
        %p247 = pneg %p157
        %p248 = pneg %p154
        %s249 = smul.u32 2, %s21
        %p250 = scmp.lt.s32.totalorder %s249, 3
        %s251 = scalar_select %p250, %s249, 3
        %s252 = smul.addr %s251, 8
        %s253 = scalar_lea.vmem %s5, %s252
        %p254 = pneg %p183
        %p255 = pneg %p180
        %s256 = smul.u32 2, %s21
        %p257 = scmp.lt.s32.totalorder %s256, 3
        %s258 = scalar_select %p257, %s256, 3
        %s259 = smul.addr %s258, 8
        %s260 = scalar_lea.vmem %s6, %s259
        %s261 = smul.u32 2, %s21
        %p262 = scmp.lt.s32.totalorder %s261, 3
        %s263 = scalar_select %p262, %s261, 3
        %s264 = smul.addr %s263, 8
        %s265 = scalar_lea.vmem %s0, %s264
        %s266 = smul.u32 2, %s21
        %s267 = smul.u32 2, %s21
        %s268 = smul.u32 2, %s21
        %p269 = scmp.lt.s32.totalorder %s268, 3
        %s270 = scalar_select %p269, %s268, 3
        %s271 = smul.addr %s270, 8
        %s272 = scalar_lea.vmem %s5, %s271
        %s273 = smul.u32 2, %s21
        %s274 = smul.u32 2, %s21
        %p275 = scmp.lt.s32.totalorder %s274, 3
        %s276 = scalar_select %p275, %s274, 3
        %s277 = smul.addr %s276, 8
        %s278 = scalar_lea.vmem %s6, %s277
        %s279 = smul.u32 2, %s21
        %v280 = vld [vmem:[%s265] sm:$0xff]
        %v281 = vld [vmem:[%s265 + $0x8] sm:$0xff]
        %v282 = vld [vmem:[%s1] sm:$0xff]
        %vm283 = vcmask 64512
        %v285 = vsel %vm283, %v280, 0
        %v288 = vsel %vm283, %v281, 0
        %290 = vmatprep.subr.mxu0 0.0
        %291 = vmatpush1.msra.mxu0 0.0
        %292 = vmatprep.subr.mxu0 0.0
        %293 = vmatpush1.msra.mxu0 0.0
        %294 = vmatprep.subr.mxu0 0.0
        %295 = vmatpush1.msra.mxu0 0.0
        %296 = vmatprep.subr.mxu0 0.0
        %297 = vmatpush1.msra.mxu0 0.0
        %298 = vmatprep.subr.mxu0 0.0
        %299 = vmatpush1.msra.mxu0 0.0
        %300 = vmatprep.subr.mxu0 0.0
        %301 = vmatpush1.msra.mxu0 0.0
        %302 = vmatprep.subr.mxu0 0.0
        %303 = vmatpush1.msra.mxu0 0.0
        %304 = vmatprep.subr.mxu0 0.0
        %305 = vmatpush1.msra.mxu0 0.0
        %306 = vmatprep.subr.mxu0 0.0
        %307 = vmatpush1.msra.mxu0 0.0
        %308 = vmatprep.subr.mxu0 0.0
        %309 = vmatpush1.msra.mxu0 0.0
        %310 = vmatprep.subr.mxu0 0.0
        %311 = vmatpush1.msra.mxu0 0.0
        %312 = vmatprep.subr.mxu0 0.0
        %313 = vmatpush1.msra.mxu0 0.0
        %314 = vmatprep.subr.mxu0 0.0
        %315 = vmatpush1.msra.mxu0 0.0
        %316 = vmatprep.subr.mxu0 0.0
        %317 = vmatpush1.msra.mxu0 0.0
        %318 = vmatprep.subr.mxu0 0.0
        %319 = vmatpush1.msra.mxu0 0.0
        %320 = vmatprep.subr.mxu0 0.0
        %321 = vmatpush1.msra.mxu0 %v282
        %322 = vmatprep.subr.mxu0 0.0
        %323 = vmatpush2.msra.mxu0 0.0
        %324 = vmatprep.subr.mxu0 0.0
        %325 = vmatpush2.msra.mxu0 0.0
        %326 = vmatprep.subr.mxu0 0.0
        %327 = vmatpush2.msra.mxu0 0.0
        %328 = vmatprep.subr.mxu0 0.0
        %329 = vmatpush2.msra.mxu0 0.0
        %330 = vmatprep.subr.mxu0 0.0
        %331 = vmatpush2.msra.mxu0 0.0
        %332 = vmatprep.subr.mxu0 0.0
        %333 = vmatpush2.msra.mxu0 0.0
        %334 = vmatprep.subr.mxu0 0.0
        %335 = vmatpush2.msra.mxu0 0.0
        %336 = vmatprep.subr.mxu0 0.0
        %337 = vmatpush2.msra.mxu0 0.0
        %338 = vmatprep.subr.mxu0 0.0
        %339 = vmatpush2.msra.mxu0 0.0
        %340 = vmatprep.subr.mxu0 0.0
        %341 = vmatpush2.msra.mxu0 0.0
        %342 = vmatprep.subr.mxu0 0.0
        %343 = vmatpush2.msra.mxu0 0.0
        %344 = vmatprep.subr.mxu0 0.0
        %345 = vmatpush2.msra.mxu0 0.0
        %346 = vmatprep.subr.mxu0 0.0
        %347 = vmatpush2.msra.mxu0 0.0
        %348 = vmatprep.subr.mxu0 0.0
        %349 = vmatpush2.msra.mxu0 0.0
        %350 = vmatprep.subr.mxu0 0.0
        %351 = vmatpush2.msra.mxu0 0.0
        %352 = vmatprep.subr.mxu0 0.0
        %353 = vmatpush2.msra.mxu0 0.0
        %354 = vmatprep.mubr.f32.mxu0 0.0
        %355 = vmatmul.mubr.f32.gmra.mxu0 %v285
        %v356 = vpop.f32.mrf.mxu0
        %v357 = vadd.f32 0.0, %v356
        %v358 = vpop.f32.mrf.mxu0
        %359 = vmatprep.mubr.f32.mxu0 0.0
        %360 = vmatmul.mubr.f32.gmra.mxu0 %v288
        %v361 = vpop.f32.mrf.mxu0
        %v362 = vadd.f32 0.0, %v361
        %v363 = vpop.f32.mrf.mxu0
        %364 = vdwg.mxu0
        %v365 = vpack.c.bf16 %v362, %v357
        %v367 = vunpack.c.l.b16 %v365
        %v368 = vunpack.c.h.b16 %v365
        %v369 = vpack.c.b16 %v367, %v367
        %v370 = vpack.c.b16 %v368, %v368
        %vm373 = vcmask 257024
        %374 = vst.msk [vmem:[%s246] sm:$0xf] %vm373, %v369
        %375 = vst.msk [vmem:[%s246 + $0x4] sm:$0xf] %vm373, %v370
        %v376 = vld [vmem:[%s2] sm:$0xf]
        %v377 = vld [vmem:[%s3] sm:$0xf]
        %v378 = vlaneseq
        %v379 = vshrl.u32 %v378, 7
        %v380 = vsub.s32 0, %v379
        %v381 = vrot.slane %v376, %v380
        %v382 = vmul.f32 %v357, %v381
        %v383 = vmul.f32 %v362, %v381
        %v384 = vsel %vm283, %v382, 0.0
        %385 = vadd.xlane.f32.xlu0 %v384
        %v386 = vpop.xlane.xlu0 %385
        %v387 = vsel %vm283, %v383, 0.0
        %388 = vadd.xlane.f32.xlu0 %v387
        %v389 = vpop.xlane.xlu0 %388
        %vm390 = vcmask 7168
        %391 = vst.msk [vmem:[%s272] sm:$0xff] %vm390, %v386
        %392 = vst.msk [vmem:[%s272 + $0x8] sm:$0xff] %vm390, %v389
        %v393 = vlaneseq
        %v394 = vshrl.u32 %v393, 7
        %v395 = vsub.s32 0, %v394
        %v396 = vrot.slane %v377, %v395
        %v397 = vmul.f32 %v357, %v396
        %v398 = vmul.f32 %v362, %v396
        %v399 = vsel %vm283, %v397, 0.0
        %400 = vadd.xlane.f32.xlu0 %v399
        %v401 = vpop.xlane.xlu0 %400
        %v402 = vsel %vm283, %v398, 0.0
        %403 = vadd.xlane.f32.xlu0 %v402
        %v404 = vpop.xlane.xlu0 %403
        %405 = vst.msk [vmem:[%s278] sm:$0xff] %vm390, %v401
        %406 = vst.msk [vmem:[%s278 + $0x8] sm:$0xff] %vm390, %v404
        %v407 = vlaneseq
        %v408 = vshrl.u32 %v407, 7
        %v409 = vsub.s32 1, %v408
        %v410 = vrot.slane %v376, %v409
        %412 = vrot.lane.b32.xlu0 %v410, 8
        %v413 = vpop.permute.xlu0 %412
        %v415 = vmul.f32 %v357, %v413
        %v416 = vmul.f32 %v362, %v413
        %419 = vrot.lane.b32.xlu0 %v415, 120
        %v420 = vpop.permute.xlu0 %419
        %421 = vrot.lane.b32.xlu0 %v416, 120
        %v422 = vpop.permute.xlu0 %421
        %v425 = vsel %vm283, %v420, 0.0
        %426 = vadd.xlane.f32.xlu0 %v425
        %v427 = vpop.xlane.xlu0 %426
        %v428 = vsel %vm283, %v422, 0.0
        %429 = vadd.xlane.f32.xlu0 %v428
        %v430 = vpop.xlane.xlu0 %429
        %vm431 = vcmask 15368
        %432 = vst.msk [vmem:[%s272] sm:$0xff] %vm431, %v427
        %433 = vst.msk [vmem:[%s272 + $0x8] sm:$0xff] %vm431, %v430
        %v434 = vlaneseq
        %v435 = vshrl.u32 %v434, 7
        %v436 = vsub.s32 1, %v435
        %v437 = vrot.slane %v377, %v436
        %439 = vrot.lane.b32.xlu0 %v437, 8
        %v440 = vpop.permute.xlu0 %439
        %v442 = vmul.f32 %v357, %v440
        %v443 = vmul.f32 %v362, %v440
        %446 = vrot.lane.b32.xlu0 %v442, 120
        %v447 = vpop.permute.xlu0 %446
        %448 = vrot.lane.b32.xlu0 %v443, 120
        %v449 = vpop.permute.xlu0 %448
        %v452 = vsel %vm283, %v447, 0.0
        %453 = vadd.xlane.f32.xlu0 %v452
        %v454 = vpop.xlane.xlu0 %453
        %v455 = vsel %vm283, %v449, 0.0
        %456 = vadd.xlane.f32.xlu0 %v455
        %v457 = vpop.xlane.xlu0 %456
        %458 = vst.msk [vmem:[%s278] sm:$0xff] %vm431, %v454
        %459 = vst.msk [vmem:[%s278 + $0x8] sm:$0xff] %vm431, %v457
        %v460 = vlaneseq
        %v461 = vshrl.u32 %v460, 7
        %v462 = vsub.s32 2, %v461
        %v463 = vrot.slane %v376, %v462
        %465 = vrot.lane.b32.xlu0 %v463, 16
        %v466 = vpop.permute.xlu0 %465
        %v468 = vmul.f32 %v357, %v466
        %v469 = vmul.f32 %v362, %v466
        %472 = vrot.lane.b32.xlu0 %v468, 112
        %v473 = vpop.permute.xlu0 %472
        %474 = vrot.lane.b32.xlu0 %v469, 112
        %v475 = vpop.permute.xlu0 %474
        %v478 = vsel %vm283, %v473, 0.0
        %479 = vadd.xlane.f32.xlu0 %v478
        %v480 = vpop.xlane.xlu0 %479
        %v481 = vsel %vm283, %v475, 0.0
        %482 = vadd.xlane.f32.xlu0 %v481
        %v483 = vpop.xlane.xlu0 %482
        %vm484 = vcmask 23568
        %485 = vst.msk [vmem:[%s272] sm:$0xff] %vm484, %v480
        %486 = vst.msk [vmem:[%s272 + $0x8] sm:$0xff] %vm484, %v483
        %v487 = vlaneseq
        %v488 = vshrl.u32 %v487, 7
        %v489 = vsub.s32 2, %v488
        %v490 = vrot.slane %v377, %v489
        %492 = vrot.lane.b32.xlu0 %v490, 16
        %v493 = vpop.permute.xlu0 %492
        %v495 = vmul.f32 %v357, %v493
        %v496 = vmul.f32 %v362, %v493
        %499 = vrot.lane.b32.xlu0 %v495, 112
        %v500 = vpop.permute.xlu0 %499
        %501 = vrot.lane.b32.xlu0 %v496, 112
        %v502 = vpop.permute.xlu0 %501
        %v505 = vsel %vm283, %v500, 0.0
        %506 = vadd.xlane.f32.xlu0 %v505
        %v507 = vpop.xlane.xlu0 %506
        %v508 = vsel %vm283, %v502, 0.0
        %509 = vadd.xlane.f32.xlu0 %v508
        %v510 = vpop.xlane.xlu0 %509
        %511 = vst.msk [vmem:[%s278] sm:$0xff] %vm484, %v507
        %512 = vst.msk [vmem:[%s278 + $0x8] sm:$0xff] %vm484, %v510
        %v513 = vlaneseq
        %v514 = vshrl.u32 %v513, 7
        %v515 = vsub.s32 3, %v514
        %v516 = vrot.slane %v376, %v515
        %518 = vrot.lane.b32.xlu0 %v516, 24
        %v519 = vpop.permute.xlu0 %518
        %v521 = vmul.f32 %v357, %v519
        %v522 = vmul.f32 %v362, %v519
        %525 = vrot.lane.b32.xlu0 %v521, 104
        %v526 = vpop.permute.xlu0 %525
        %527 = vrot.lane.b32.xlu0 %v522, 104
        %v528 = vpop.permute.xlu0 %527
        %v531 = vsel %vm283, %v526, 0.0
        %532 = vadd.xlane.f32.xlu0 %v531
        %v533 = vpop.xlane.xlu0 %532
        %v534 = vsel %vm283, %v528, 0.0
        %535 = vadd.xlane.f32.xlu0 %v534
        %v536 = vpop.xlane.xlu0 %535
        %vm537 = vcmask 31768
        %538 = vst.msk [vmem:[%s272] sm:$0xff] %vm537, %v533
        %539 = vst.msk [vmem:[%s272 + $0x8] sm:$0xff] %vm537, %v536
        %v540 = vlaneseq
        %v541 = vshrl.u32 %v540, 7
        %v542 = vsub.s32 3, %v541
        %v543 = vrot.slane %v377, %v542
        %545 = vrot.lane.b32.xlu0 %v543, 24
        %v546 = vpop.permute.xlu0 %545
        %v548 = vmul.f32 %v357, %v546
        %v549 = vmul.f32 %v362, %v546
        %552 = vrot.lane.b32.xlu0 %v548, 104
        %v553 = vpop.permute.xlu0 %552
        %554 = vrot.lane.b32.xlu0 %v549, 104
        %v555 = vpop.permute.xlu0 %554
        %v558 = vsel %vm283, %v553, 0.0
        %559 = vadd.xlane.f32.xlu0 %v558
        %v560 = vpop.xlane.xlu0 %559
        %v561 = vsel %vm283, %v555, 0.0
        %562 = vadd.xlane.f32.xlu0 %v561
        %v563 = vpop.xlane.xlu0 %562
        %564 = vst.msk [vmem:[%s278] sm:$0xff] %vm537, %v560
        %565 = vst.msk [vmem:[%s278 + $0x8] sm:$0xff] %vm537, %v563
        %s566 = sand.u32 %s118, 1
        %s567 = scalar_lea.sflag [#allocation3], %s566
        %s568 = sand.u32 %s118, 1
        %s569 = smul.addr %s568, 8
        %s570 = scalar_lea.vmem [#allocation2], %s569
        %s571 = smul.u32 2, %s21
        %p572 = scmp.lt.s32.totalorder %s571, 3
        %s573 = scalar_select %p572, %s571, 3
        %s574 = smul.addr %s573, 8
        %s575 = scalar_lea.vmem %s5, %s574
        %s576 = smul.u32 2, %s21
        %p577 = scmp.lt.s32.totalorder %s576, 3
        %s578 = scalar_select %p577, %s576, 3
        %s579 = smul.addr %s578, 8
        %s580 = scalar_lea.vmem %s6, %s579
        // Predicated region
        $region37: #{tpu_custom_call.1} parent=35 // pred_check
          %p581 = pneg %p128
        $region38: #{tpu_custom_call.1} parent=35 // pred_check_branch
          %583 = sbr.rel (%p581) target = $region40
        $region39: #{tpu_custom_call.1} parent=35 // pred_region
          %s584 = smul.u32 2, %s21
          %s586 = ssub.s32 128, 128
          %587 = vsyncadd %s567, %s586
          %s588 = smul.addr %s584, 64
          %s589 = scalar_lea.hbm %s4, %s588
          %s590 = sshll.u32 %s570, 4
          %s591 = int_to_ptr.vmem [resolvable:$true] %s590
          %596 = dma.vmem_to_hbm [thread:$0]  %s591, 128, %s589, %s567, 64, 64, 4
        $region40: #{tpu_custom_call.1} parent=35 // pred_fallthru
          _
        // Predicated region
        $region41: #{tpu_custom_call.1} parent=35 // pred_check
          %p597 = pneg %p154
        $region42: #{tpu_custom_call.1} parent=35 // pred_check_branch
          %599 = sbr.rel (%p597) target = $region44
        $region43: #{tpu_custom_call.1} parent=35 // pred_region
          %s600 = smul.u32 2, %s21
        $region44: #{tpu_custom_call.1} parent=35 // pred_fallthru
          _
        // Predicated region
        $region45: #{tpu_custom_call.1} parent=35 // pred_check
          %p601 = pneg %p180
        $region46: #{tpu_custom_call.1} parent=35 // pred_check_branch
          %603 = sbr.rel (%p601) target = $region48
        $region47: #{tpu_custom_call.1} parent=35 // pred_region
          %s604 = smul.u32 2, %s21
        $region48: #{tpu_custom_call.1} parent=35 // pred_fallthru
          _
      $region36: #{tpu_custom_call.1} parent=5 // pred_fallthru
        _
      %p605 = scmp.le.s32.totalorder 2, %s16
      // Predicated region
      $region49: #{tpu_custom_call.1} parent=5 // pred_check
        %p606 = pneg %p605
      $region50: #{tpu_custom_call.1} parent=5 // pred_check_branch
        %608 = sbr.rel (%p606) target = $region52
      $region51: #{tpu_custom_call.1} parent=5 // pred_region
        %s609 = ssub.s32 %s16, 2
        // Predicated region
        $region53: #{tpu_custom_call.1} parent=51 // pred_check
          %p610 = pneg %p134
        $region54: #{tpu_custom_call.1} parent=51 // pred_check_branch
          %612 = sbr.rel (%p610) target = $region56
        $region55: #{tpu_custom_call.1} parent=51 // pred_region
          %s613 = sand.u32 %s119, 1
          %s614 = scalar_lea.sflag [#allocation3], %s613
          %s615 = sand.u32 %s119, 1
          %s616 = smul.addr %s615, 8
          %s617 = scalar_lea.vmem [#allocation2], %s616
          %618 = dma.done %s614, 128
        $region56: #{tpu_custom_call.1} parent=51 // pred_fallthru
          _
        // Predicated region
        $region57: #{tpu_custom_call.1} parent=51 // pred_check
          %p619 = pneg %p160
        $region58: #{tpu_custom_call.1} parent=51 // pred_check_branch
          %621 = sbr.rel (%p619) target = $region60
        $region59: #{tpu_custom_call.1} parent=51 // pred_region
          %s622 = smul.u32 2, %s22
          %p623 = scmp.lt.s32.totalorder %s622, 3
          %s624 = scalar_select %p623, %s622, 3
          %s625 = smul.addr %s624, 8
          %s626 = scalar_lea.vmem %s5, %s625
        $region60: #{tpu_custom_call.1} parent=51 // pred_fallthru
          _
        // Predicated region
        $region61: #{tpu_custom_call.1} parent=51 // pred_check
          %p627 = pneg %p186
        $region62: #{tpu_custom_call.1} parent=51 // pred_check_branch
          %629 = sbr.rel (%p627) target = $region64
        $region63: #{tpu_custom_call.1} parent=51 // pred_region
          %s630 = smul.u32 2, %s22
          %p631 = scmp.lt.s32.totalorder %s630, 3
          %s632 = scalar_select %p631, %s630, 3
          %s633 = smul.addr %s632, 8
          %s634 = scalar_lea.vmem %s6, %s633
        $region64: #{tpu_custom_call.1} parent=51 // pred_fallthru
          _
      $region52: #{tpu_custom_call.1} parent=5 // pred_fallthru
        _
    $region6: #{tpu_custom_call.1} parent=1 // loop_footer
      %s20 = sadd.s32 1, %s16
    $region7: #{tpu_custom_call.1} parent=1 // loop_footer_branch
      %15 = sbr.rel target = $region3
    $region8: #{tpu_custom_call.1} parent=1 // loop_exit
      _
    %635 = vsyncpa [#allocation3], 1
    %s636 = scalar_lea.sflag [#allocation3], 1
    %637 = vsyncpa %s636, 1

</llo_original>
